<compile_context>
chip_gen: v7x
topology: tpu7x:2x2x1
jax: 0.10.0
libtpu: 0.0.40
codegen_flags: <defaults>
</compile_context>

<pallas_src>
import jax
import jax.numpy as jnp
from jax.experimental import pallas as pl
from jax.experimental.pallas import tpu as pltpu

_EPS = 1e-8


def _neg_cos_sim_kernel(p1_ref, p2_ref, z1_ref, z2_ref, out_ref):
    """One batch tile: row-sum of cos(p1,z2) + cos(p2,z1) -> (1,1,128) block."""
    eps2 = jnp.float32(_EPS * _EPS)

    def cos_rowsum(x_ref, y_ref):
        # Cast per-operand right before the reduction (no-op for f32 inputs;
        # for bf16 inputs it avoids keeping four full f32 tile copies live).
        x = x_ref[...].astype(jnp.float32)
        y = y_ref[...].astype(jnp.float32)
        dot = jnp.sum(x * y, axis=1, keepdims=True)   # (TB, 1)
        sxx = jnp.sum(x * x, axis=1, keepdims=True)   # (TB, 1)
        syy = jnp.sum(y * y, axis=1, keepdims=True)   # (TB, 1)
        # sqrt(max(sxx*syy, eps^2)) == max(||x||*||y||, eps), so this matches
        # dot / max(nx*ny, eps) while using the EUP (rsqrt) instead of two
        # sqrts + a true divide.
        cos = dot * jax.lax.rsqrt(jnp.maximum(sxx * syy, eps2))
        return jnp.sum(cos)

    partial = cos_rowsum(p1_ref, z2_ref) + cos_rowsum(p2_ref, z1_ref)
    # Lane-dense output block; the wrapper only reads lane 0.
    out_ref[...] = jnp.broadcast_to(partial, out_ref.shape).astype(jnp.float32)


def _pick_tile_rows(B, D, itemsize):
    """Largest power-of-two row tile that divides B and keeps 4 inputs x 2
    pipeline buffers under ~28 MiB (fits the 32 MiB scoped VMEM default on
    every generation, including v7x with its 64 MiB physical VMEM)."""
    vmem_budget = 28 * 1024 * 1024
    max_rows = max(8, vmem_budget // (4 * 2 * D * itemsize))
    for cand in (2048, 1024, 512, 256, 128, 64, 32, 16, 8):
        if cand <= max_rows and B % cand == 0:
            return cand
    # Fallback: a single full-array block (always a legal block shape).
    return B


def negative_cosine_sim_loss(p1, p2, z1, z2):
    """Pallas TPU implementation of NegativeCosineSimLoss.forward."""
    assert p1.shape == p2.shape == z1.shape == z2.shape
    assert p1.ndim == 2
    B, D = p1.shape
    itemsize = jnp.dtype(p1.dtype).itemsize

    tb = _pick_tile_rows(B, D, itemsize)
    num_tiles = B // tb if B % tb == 0 else 1
    if num_tiles == 1:
        tb = B  # single full block

    in_spec = pl.BlockSpec((tb, D), lambda i: (i, 0))
    out_spec = pl.BlockSpec((1, 1, 128), lambda i: (i, 0, 0))

    cost = pl.CostEstimate(
        flops=8 * B * D,                       # 3 mul-adds/elem per pair, 2 pairs
        transcendentals=4 * B,                 # rsqrt-ish epilogue per row
        bytes_accessed=4 * B * D * itemsize,   # reads dominate; output is tiny
    )

    partials = pl.pallas_call(
        _neg_cos_sim_kernel,
        out_shape=jax.ShapeDtypeStruct((num_tiles, 1, 128), jnp.float32),
        grid_spec=pltpu.PrefetchScalarGridSpec(
            num_scalar_prefetch=0,
            grid=(num_tiles,),
            in_specs=[in_spec, in_spec, in_spec, in_spec],
            out_specs=out_spec,
        ),
        compiler_params=pltpu.CompilerParams(
            dimension_semantics=("parallel",),  # independent tiles -> megacore
        ),
        cost_estimate=cost,
    )(p1, p2, z1, z2)

    # Final tiny reduction in JAX: divide by the TRUE total batch size B.
    total_cos = jnp.sum(partials[:, 0, 0])
    return -(total_cos / B) * 0.5


def _reference(p1, p2, z1, z2):
    eps = 1e-8

    def mean_cos(x, y):
        x = x.astype(jnp.float32)
        y = y.astype(jnp.float32)
        dot = jnp.sum(x * y, axis=1)
        nx = jnp.sqrt(jnp.sum(x * x, axis=1))
        ny = jnp.sqrt(jnp.sum(y * y, axis=1))
        return jnp.mean(dot / jnp.maximum(nx * ny, eps))

    return -(mean_cos(p1, z2) + mean_cos(p2, z1)) * 0.5


if __name__ == "__main__":
    key = jax.random.PRNGKey(0)
    k1, k2, k3, k4 = jax.random.split(key, 4)

    B, D = 8, 128  # small SimSiam-style projection batch
    p1 = jax.random.normal(k1, (B, D), dtype=jnp.float32)
    p2 = jax.random.normal(k2, (B, D), dtype=jnp.float32)
    z1 = jax.random.normal(k3, (B, D), dtype=jnp.float32)
    z2 = jax.random.normal(k4, (B, D), dtype=jnp.float32)

    loss = negative_cosine_sim_loss(p1, p2, z1, z2)
    jax.block_until_ready(loss)

    ref = _reference(p1, p2, z1, z2)
    assert jnp.allclose(loss, ref, atol=1e-5, rtol=1e-5), (loss, ref)

    print("KERNEL_OK")
</pallas_src>

<mosaic_0001>
module attributes {stable_mosaic.version = 11 : i64} {
  func.func @_neg_cos_sim_kernel(%arg0: i32, %arg1: memref<8x128xf32, #tpu.memory_space<vmem>>, %arg2: memref<8x128xf32, #tpu.memory_space<vmem>>, %arg3: memref<8x128xf32, #tpu.memory_space<vmem>>, %arg4: memref<8x128xf32, #tpu.memory_space<vmem>>, %arg5: memref<1x1x128xf32, #tpu.memory_space<vmem>>) attributes {dimension_semantics = [#tpu.dimension_semantics<parallel>], iteration_bounds = array<i64: 1>, scalar_prefetch = 0 : i64, scratch_operands = 0 : i64, tpu.core_type = #tpu.core_type<tc>, window_params = [{transform_indices = @transform_0, window_bounds = array<i64: 8, 128>}, {transform_indices = @transform_1, window_bounds = array<i64: 8, 128>}, {transform_indices = @transform_2, window_bounds = array<i64: 8, 128>}, {transform_indices = @transform_3, window_bounds = array<i64: 8, 128>}, {transform_indices = @transform_4, window_bounds = array<i64: 1, 1, 128>}]} {
    %c0 = arith.constant 0 : index
    %c0_0 = arith.constant 0 : index
    %0 = vector.load %arg1[%c0, %c0_0] : memref<8x128xf32, #tpu.memory_space<vmem>>, vector<8x128xf32>
    %c0_1 = arith.constant 0 : index
    %c0_2 = arith.constant 0 : index
    %1 = vector.load %arg4[%c0_1, %c0_2] : memref<8x128xf32, #tpu.memory_space<vmem>>, vector<8x128xf32>
    %2 = arith.mulf %0, %1 : vector<8x128xf32>
    %cst = arith.constant dense<0.000000e+00> : vector<8xf32>
    %3 = vector.multi_reduction <add>, %2, %cst [1] : vector<8x128xf32> to vector<8xf32>
    %4 = vector.shape_cast %3 : vector<8xf32> to vector<8x1xf32>
    %5 = arith.mulf %0, %0 : vector<8x128xf32>
    %cst_3 = arith.constant dense<0.000000e+00> : vector<8xf32>
    %6 = vector.multi_reduction <add>, %5, %cst_3 [1] : vector<8x128xf32> to vector<8xf32>
    %7 = vector.shape_cast %6 : vector<8xf32> to vector<8x1xf32>
    %8 = arith.mulf %1, %1 : vector<8x128xf32>
    %cst_4 = arith.constant dense<0.000000e+00> : vector<8xf32>
    %9 = vector.multi_reduction <add>, %8, %cst_4 [1] : vector<8x128xf32> to vector<8xf32>
    %10 = vector.shape_cast %9 : vector<8xf32> to vector<8x1xf32>
    %11 = arith.mulf %7, %10 : vector<8x1xf32>
    %cst_5 = arith.constant 1.000000e-16 : f32
    %12 = vector.broadcast %cst_5 : f32 to vector<8x1xf32>
    %13 = arith.maximumf %11, %12 : vector<8x1xf32>
    %14 = math.rsqrt %13 : vector<8x1xf32>
    %15 = arith.mulf %4, %14 : vector<8x1xf32>
    %16 = vector.shape_cast %15 : vector<8x1xf32> to vector<1x8x1xf32>
    %cst_6 = arith.constant dense<0.000000e+00> : vector<1xf32>
    %17 = vector.multi_reduction <add>, %16, %cst_6 [1, 2] : vector<1x8x1xf32> to vector<1xf32>
    %18 = vector.shape_cast %17 : vector<1xf32> to vector<1x1x1xf32>
    %19 = vector.extract %18[0, 0, 0] : f32 from vector<1x1x1xf32>
    %c0_7 = arith.constant 0 : index
    %c0_8 = arith.constant 0 : index
    %20 = vector.load %arg2[%c0_7, %c0_8] : memref<8x128xf32, #tpu.memory_space<vmem>>, vector<8x128xf32>
    %c0_9 = arith.constant 0 : index
    %c0_10 = arith.constant 0 : index
    %21 = vector.load %arg3[%c0_9, %c0_10] : memref<8x128xf32, #tpu.memory_space<vmem>>, vector<8x128xf32>
    %22 = arith.mulf %20, %21 : vector<8x128xf32>
    %cst_11 = arith.constant dense<0.000000e+00> : vector<8xf32>
    %23 = vector.multi_reduction <add>, %22, %cst_11 [1] : vector<8x128xf32> to vector<8xf32>
    %24 = vector.shape_cast %23 : vector<8xf32> to vector<8x1xf32>
    %25 = arith.mulf %20, %20 : vector<8x128xf32>
    %cst_12 = arith.constant dense<0.000000e+00> : vector<8xf32>
    %26 = vector.multi_reduction <add>, %25, %cst_12 [1] : vector<8x128xf32> to vector<8xf32>
    %27 = vector.shape_cast %26 : vector<8xf32> to vector<8x1xf32>
    %28 = arith.mulf %21, %21 : vector<8x128xf32>
    %cst_13 = arith.constant dense<0.000000e+00> : vector<8xf32>
    %29 = vector.multi_reduction <add>, %28, %cst_13 [1] : vector<8x128xf32> to vector<8xf32>
    %30 = vector.shape_cast %29 : vector<8xf32> to vector<8x1xf32>
    %31 = arith.mulf %27, %30 : vector<8x1xf32>
    %cst_14 = arith.constant 1.000000e-16 : f32
    %32 = vector.broadcast %cst_14 : f32 to vector<8x1xf32>
    %33 = arith.maximumf %31, %32 : vector<8x1xf32>
    %34 = math.rsqrt %33 : vector<8x1xf32>
    %35 = arith.mulf %24, %34 : vector<8x1xf32>
    %36 = vector.shape_cast %35 : vector<8x1xf32> to vector<1x8x1xf32>
    %cst_15 = arith.constant dense<0.000000e+00> : vector<1xf32>
    %37 = vector.multi_reduction <add>, %36, %cst_15 [1, 2] : vector<1x8x1xf32> to vector<1xf32>
    %38 = vector.shape_cast %37 : vector<1xf32> to vector<1x1x1xf32>
    %39 = vector.extract %38[0, 0, 0] : f32 from vector<1x1x1xf32>
    %40 = arith.addf %19, %39 : f32
    %41 = vector.broadcast %40 : f32 to vector<1x1x128xf32>
    %c0_16 = arith.constant 0 : index
    %c0_17 = arith.constant 0 : index
    %c0_18 = arith.constant 0 : index
    %42 = vector.load %arg5[%c0_16, %c0_17, %c0_18] : memref<1x1x128xf32, #tpu.memory_space<vmem>>, vector<1x1x128xf32>
    tpu.vector_store %arg5[%c0_16, %c0_17, %c0_18], %41 {strides = array<i32>} : memref<1x1x128xf32, #tpu.memory_space<vmem>>, vector<1x1x128xf32>,
    return
  }
  func.func @transform_0(%arg0: i32) -> (i32, i32) {
    %c0_i32 = arith.constant 0 : i32
    %c0_i32_0 = arith.constant 0 : i32
    return %arg0, %c0_i32 : i32, i32
  }
  func.func @transform_1(%arg0: i32) -> (i32, i32) {
    %c0_i32 = arith.constant 0 : i32
    %c0_i32_0 = arith.constant 0 : i32
    return %arg0, %c0_i32 : i32, i32
  }
  func.func @transform_2(%arg0: i32) -> (i32, i32) {
    %c0_i32 = arith.constant 0 : i32
    %c0_i32_0 = arith.constant 0 : i32
    return %arg0, %c0_i32 : i32, i32
  }
  func.func @transform_3(%arg0: i32) -> (i32, i32) {
    %c0_i32 = arith.constant 0 : i32
    %c0_i32_0 = arith.constant 0 : i32
    return %arg0, %c0_i32 : i32, i32
  }
  func.func @transform_4(%arg0: i32) -> (i32, i32, i32) {
    %c0_i32 = arith.constant 0 : i32
    %c0_i32_0 = arith.constant 0 : i32
    %c0_i32_1 = arith.constant 0 : i32
    return %arg0, %c0_i32, %c0_i32_0 : i32, i32, i32
  }
}

</mosaic_0001>

<llo_original>
// kernel: tpu_custom_call.1
$region0: #{tpu_custom_call.1}
  #allocation0 [shape = 'u32[]', space=smem, size = 0x4, offset = 0x4, fixed_abs, tag = 'smem constant byte address 0x4 - core index']
  #allocation1 [shape = 'u32[144,128]{1,0:T(1,128)}', space=vmem, size = 0x12000, scoped, tag = 'internal scratch']
  %s0 = inlined_call_operand.hbm [shape: f32[8,128], index: 0, kind: input, shape index: {}]
  %s1 = inlined_call_operand.hbm [shape: f32[8,128], index: 1, kind: input, shape index: {}]
  %s2 = inlined_call_operand.hbm [shape: f32[8,128], index: 2, kind: input, shape index: {}]
  %s3 = inlined_call_operand.vmem [shape: f32[8,128], index: 3, kind: input, shape index: {}]
  %s4 = inlined_call_operand.hbm [shape: f32[1,1,128], index: 4, kind: output, shape index: {}]
  %s5 = sld [smem:[#allocation0]]
  $region38: #{tpu_custom_call.1} parent=0
    _
  %s7 = ssub.s32 1, %s5
  %s8 = scalar_select 0, %s7, %s5
  $region1: #{tpu_custom_call.1} parent=0
    #allocation2 [shape = 'u8[4096]{0}', space=vmem, size = 0x1000, scoped, tag = 'input window, operand 0, single buffered']
    #allocation3 [shape = 's32[1]{0}', space=sflag, size = 0x4, scoped, tag = 'scoped memory for tpu_custom_call.1']
    #allocation4 [shape = 's32[1]{0}', space=sflag, size = 0x4, scoped, tag = 'scoped memory for tpu_custom_call.1']
    #allocation5 [shape = 'u8[4096]{0}', space=vmem, size = 0x1000, scoped, tag = 'input window, operand 1, single buffered']
    #allocation6 [shape = 's32[1]{0}', space=sflag, size = 0x4, scoped, tag = 'scoped memory for tpu_custom_call.1']
    #allocation7 [shape = 'u8[4096]{0}', space=vmem, size = 0x1000, scoped, tag = 'input window, operand 2, single buffered']
    #allocation8 [shape = 'u8[512]{0}', space=vmem, size = 0x400, scoped, tag = 'output window, operand 0, single buffered']
    %9 = vsyncpa [#allocation3], 0
    %10 = vsyncpa [#allocation6], 0
    %11 = vsyncpa [#allocation4], 0
    // Predicated region
    $region2: #{tpu_custom_call.1} parent=1 // pred_check
      _
    $region3: #{tpu_custom_call.1} parent=1 // pred_check_branch
      %13 = sbr.rel (0) target = $region5
    $region4: #{tpu_custom_call.1} parent=1 // pred_region
      %s15 = ssub.s32 128, 128
      %16 = vsyncadd [#allocation3], %s15
      %s18 = sshll.u32 [#allocation2], 4
      %s19 = int_to_ptr.vmem [resolvable:$true] %s18
      %21 = dma.hbm_to_vmem [thread:$0]  %s0, 128, %s19, [#allocation3]
    $region5: #{tpu_custom_call.1} parent=1 // pred_fallthru
      _
    // Predicated region
    $region6: #{tpu_custom_call.1} parent=1 // pred_check
      _
    $region7: #{tpu_custom_call.1} parent=1 // pred_check_branch
      %23 = sbr.rel (0) target = $region9
    $region8: #{tpu_custom_call.1} parent=1 // pred_region
      %s25 = ssub.s32 128, 128
      %26 = vsyncadd [#allocation6], %s25
      %s28 = sshll.u32 [#allocation5], 4
      %s29 = int_to_ptr.vmem [resolvable:$true] %s28
      %31 = dma.hbm_to_vmem [thread:$0]  %s1, 128, %s29, [#allocation6]
    $region9: #{tpu_custom_call.1} parent=1 // pred_fallthru
      _
    // Predicated region
    $region10: #{tpu_custom_call.1} parent=1 // pred_check
      _
    $region11: #{tpu_custom_call.1} parent=1 // pred_check_branch
      %33 = sbr.rel (0) target = $region13
    $region12: #{tpu_custom_call.1} parent=1 // pred_region
      %s35 = ssub.s32 128, 128
      %36 = vsyncadd [#allocation6], %s35
      %s38 = sshll.u32 [#allocation7], 4
      %s39 = int_to_ptr.vmem [resolvable:$true] %s38
      %41 = dma.hbm_to_vmem [thread:$0]  %s2, 128, %s39, [#allocation6]
    $region13: #{tpu_custom_call.1} parent=1 // pred_fallthru
      _
    // Predicated region
    $region14: #{tpu_custom_call.1} parent=1 // pred_check
      _
    $region15: #{tpu_custom_call.1} parent=1 // pred_check_branch
      %43 = sbr.rel (0) target = $region17
    $region16: #{tpu_custom_call.1} parent=1 // pred_region
      _
    $region17: #{tpu_custom_call.1} parent=1 // pred_fallthru
      _
    // Predicated region
    $region18: #{tpu_custom_call.1} parent=1 // pred_check
      _
    $region19: #{tpu_custom_call.1} parent=1 // pred_check_branch
      %45 = sbr.rel (0) target = $region21
    $region20: #{tpu_custom_call.1} parent=1 // pred_region
      %46 = dma.done [#allocation3], 128
    $region21: #{tpu_custom_call.1} parent=1 // pred_fallthru
      _
    // Predicated region
    $region22: #{tpu_custom_call.1} parent=1 // pred_check
      _
    $region23: #{tpu_custom_call.1} parent=1 // pred_check_branch
      %48 = sbr.rel (0) target = $region25
    $region24: #{tpu_custom_call.1} parent=1 // pred_region
      %49 = dma.done [#allocation6], 128
    $region25: #{tpu_custom_call.1} parent=1 // pred_fallthru
      _
    // Predicated region
    $region26: #{tpu_custom_call.1} parent=1 // pred_check
      _
    $region27: #{tpu_custom_call.1} parent=1 // pred_check_branch
      %51 = sbr.rel (0) target = $region29
    $region28: #{tpu_custom_call.1} parent=1 // pred_region
      %52 = dma.done [#allocation6], 128
    $region29: #{tpu_custom_call.1} parent=1 // pred_fallthru
      _
    %v53 = vld [vmem:[#allocation2] sm:$0xff]
    %v54 = vld [vmem:[%s3] sm:$0xff]
    %v55 = vmul.f32 %v53, %v54
    %56 = vadd.xlane.f32.xlu0 %v55
    %v57 = vpop.xlane.xlu0 %56
    %v58 = vmul.f32 %v53, %v53
    %59 = vadd.xlane.f32.xlu0 %v58
    %v60 = vpop.xlane.xlu0 %59
    %v61 = vmul.f32 %v54, %v54
    %62 = vadd.xlane.f32.xlu0 %v61
    %v63 = vpop.xlane.xlu0 %62
    %v64 = vmul.f32 %v60, %v63
    %v65 = vmax.f32 %v64, 1e-16
    %v66 = vrsqrt.pop %v65
    %v67 = vmul.f32 %v57, %v66
    %vm68 = vcmask 7168
    %v69 = vsel %vm68, %v67, 0.0
    %70 = vadd.xlane.f32.xlu0 %v69
    %v71 = vpop.xlane.xlu0 %70
    %v72 = vrot.slane %v71, 4
    %v73 = vadd.f32 %v71, %v72
    %v74 = vrot.slane %v73, 2
    %v75 = vadd.f32 %v73, %v74
    %v76 = vrot.slane %v75, 1
    %v77 = vadd.f32 %v75, %v76
    %s78 = vtos %v77
    %v79 = vld [vmem:[#allocation5] sm:$0xff]
    %v80 = vld [vmem:[#allocation7] sm:$0xff]
    %v81 = vmul.f32 %v79, %v80
    %82 = vadd.xlane.f32.xlu0 %v81
    %v83 = vpop.xlane.xlu0 %82
    %v84 = vmul.f32 %v79, %v79
    %85 = vadd.xlane.f32.xlu0 %v84
    %v86 = vpop.xlane.xlu0 %85
    %v87 = vmul.f32 %v80, %v80
    %88 = vadd.xlane.f32.xlu0 %v87
    %v89 = vpop.xlane.xlu0 %88
    %v90 = vmul.f32 %v86, %v89
    %v91 = vmax.f32 %v90, 1e-16
    %v92 = vrsqrt.pop %v91
    %v93 = vmul.f32 %v83, %v92
    %v94 = vsel %vm68, %v93, 0.0
    %95 = vadd.xlane.f32.xlu0 %v94
    %v96 = vpop.xlane.xlu0 %95
    %v97 = vrot.slane %v96, 4
    %v98 = vadd.f32 %v96, %v97
    %v99 = vrot.slane %v98, 2
    %v100 = vadd.f32 %v98, %v99
    %v101 = vrot.slane %v100, 1
    %v102 = vadd.f32 %v100, %v101
    %s103 = vtos %v102
    %s104 = sadd.f32 %s78, %s103
    %v105 = vstv %s104
    %106 = vst [vmem:[#allocation8] sm:$0x1] %v105
    // Predicated region
    $region30: #{tpu_custom_call.1} parent=1 // pred_check
      _
    $region31: #{tpu_custom_call.1} parent=1 // pred_check_branch
      %108 = sbr.rel (0) target = $region33
    $region32: #{tpu_custom_call.1} parent=1 // pred_region
      %s110 = ssub.s32 16, 16
      %111 = vsyncadd [#allocation4], %s110
      %s113 = sshll.u32 [#allocation8], 4
      %s114 = int_to_ptr.vmem [resolvable:$true] %s113
      %116 = dma.vmem_to_hbm [thread:$0]  %s114, 16, %s4, [#allocation4]
    $region33: #{tpu_custom_call.1} parent=1 // pred_fallthru
      _
    // Predicated region
    $region34: #{tpu_custom_call.1} parent=1 // pred_check
      _
    $region35: #{tpu_custom_call.1} parent=1 // pred_check_branch
      %118 = sbr.rel (0) target = $region37
    $region36: #{tpu_custom_call.1} parent=1 // pred_region
      %119 = dma.done [#allocation4], 16
    $region37: #{tpu_custom_call.1} parent=1 // pred_fallthru
      _
    %120 = vsyncpa [#allocation3], 1
    %121 = vsyncpa [#allocation6], 1
    %122 = vsyncpa [#allocation4], 1

</llo_original>
